<compile_context>
chip_gen: v6e
topology: v6e:2x2x1
jax: 0.10.0
libtpu: 0.0.40
codegen_flags: <defaults>
</compile_context>

<pallas_src>
import math

import jax
import jax.numpy as jnp
from jax.experimental import pallas as pl
from jax.experimental.pallas import tpu as pltpu


def _layer_scale_kernel(x_ref, gamma_ref, o_ref):
    # Single fused VPU multiply; gamma (1, W) broadcasts over the sublane axis.
    o_ref[...] = x_ref[...] * gamma_ref[...]


def _round_up(a: int, b: int) -> int:
    return -(-a // b) * b


# Inputs smaller than this just use plain JAX (fusable, no launch overhead).
_MIN_PALLAS_BYTES = 512 * 1024
# Aim for >= this many grid steps (pipelining + v7x megacore sharding).
_MIN_GRID = 4
# Target tile size: big enough to amortize per-step overhead even at v7x's
# 3.2 TB/s HBM bandwidth, small enough that 4 double-buffers fit v7x's VMEM.
_TARGET_TILE_BYTES = 8 * 1024 * 1024


def layer_scale(x: jax.Array, gamma: jax.Array) -> jax.Array:
    """Computes x * gamma where gamma has shape (D,) and broadcasts over the
    trailing dimension of x (same semantics as the PyTorch LayerScale)."""
    orig_shape = x.shape
    d = orig_shape[-1]
    assert gamma.shape == (d,)

    itemsize = jnp.dtype(x.dtype).itemsize
    total = x.size

    # Small-size bypass: let XLA fuse the elementwise multiply.
    if total * itemsize < _MIN_PALLAS_BYTES:
        return x * gamma.astype(x.dtype)

    # Lane-dense width: smallest multiple of both D (so gamma tiling preserves
    # exact broadcast semantics) and 128 (so vregs are full, stores unmasked).
    w = (d * 128) // math.gcd(d, 128)  # lcm(d, 128)
    gamma_row = jnp.tile(gamma, w // d).reshape(1, w).astype(x.dtype)

    # Pad the flattened array up to a multiple of W instead of falling back to
    # a narrow-lane layout; padded tail is sliced off after the call.
    pad = (-total) % w
    x_flat = x.reshape(-1)
    if pad:
        x_flat = jnp.concatenate([x_flat, jnp.zeros((pad,), dtype=x.dtype)])
    x2d = x_flat.reshape(-1, w)  # (M, W)
    m = x2d.shape[0]

    # Sublane packing per dtype: f32 -> 8, bf16 -> 16, int8/fp8 -> 32.
    sublane = {4: 8, 2: 16, 1: 32}.get(itemsize, 8)

    if m <= sublane:
        tm = m  # full extent: always a legal block shape
    else:
        tm = max(sublane,
                 (_TARGET_TILE_BYTES // (w * itemsize)) // sublane * sublane)
        # Ensure at least _MIN_GRID steps so the DMA pipeline overlaps and the
        # "parallel" axis can shard across v7x's two TensorCores.
        tm = min(tm, _round_up(pl.cdiv(m, _MIN_GRID), sublane))
        tm = max(tm, sublane)
    grid_m = pl.cdiv(m, tm)

    # 2 input buffers + 2 output buffers (double-buffered) + gamma + slack.
    tile_bytes = tm * w * itemsize
    vmem_limit = 4 * tile_bytes + 2 * 1024 * 1024
    vmem_limit = max(vmem_limit, 16 * 1024 * 1024)
    vmem_limit = min(vmem_limit, 48 * 1024 * 1024)  # stay under v7x's 64 MiB

    out2d = pl.pallas_call(
        _layer_scale_kernel,
        out_shape=jax.ShapeDtypeStruct((m, w), x.dtype),
        grid=(grid_m,),
        in_specs=[
            pl.BlockSpec((tm, w), lambda i: (i, 0)),
            pl.BlockSpec((1, w), lambda i: (0, 0)),  # gamma: resident, loaded once
        ],
        out_specs=pl.BlockSpec((tm, w), lambda i: (i, 0)),
        compiler_params=pltpu.CompilerParams(
            dimension_semantics=("parallel",),
            vmem_limit_bytes=int(vmem_limit),
        ),
    )(x2d, gamma_row)

    out_flat = out2d.reshape(-1)
    if pad:
        out_flat = out_flat[:total]
    return out_flat.reshape(orig_shape)


if __name__ == "__main__":
    # Module config (deterministic, synthetic init): dim = hidden = 32.
    dim = 32
    init_values = 1e-5
    gamma = init_values * jnp.ones((dim,), dtype=jnp.float32)  # nn.Parameter init

    key = jax.random.PRNGKey(0)
    k_small, k_large = jax.random.split(key)

    # Small input consistent with the module (batch=2, seq=8, hidden=32).
    # This goes through the fused plain-JAX bypass (kernel would be overhead).
    x_small = jax.random.normal(k_small, (2, 8, dim), dtype=jnp.float32)
    out_small = jax.block_until_ready(layer_scale(x_small, gamma))
    assert out_small.shape == x_small.shape
    assert jnp.allclose(out_small, x_small * gamma, atol=1e-6, rtol=1e-6)

    # Moderately larger input (batch=4, seq=2048, hidden=32, ~1 MiB) that
    # exercises the Pallas kernel path (lane-dense repack, tiled grid).
    x_large = jax.random.normal(k_large, (4, 2048, dim), dtype=jnp.float32)
    out_large = jax.block_until_ready(layer_scale(x_large, gamma))
    assert out_large.shape == x_large.shape
    assert jnp.allclose(out_large, x_large * gamma, atol=1e-6, rtol=1e-6)

    print("KERNEL_OK")
</pallas_src>

<mosaic_0001>
module attributes {stable_mosaic.version = 11 : i64} {
  func.func @_layer_scale_kernel(%arg0: i32, %arg1: memref<512x128xf32, #tpu.memory_space<vmem>>, %arg2: memref<1x128xf32, #tpu.memory_space<vmem>>, %arg3: memref<512x128xf32, #tpu.memory_space<vmem>>) attributes {dimension_semantics = [#tpu.dimension_semantics<parallel>], iteration_bounds = array<i64: 4>, scalar_prefetch = 0 : i64, scratch_operands = 0 : i64, tpu.core_type = #tpu.core_type<tc>, window_params = [{transform_indices = @transform_0, window_bounds = array<i64: 512, 128>}, {pipeline_mode = #tpu.pipeline_mode<synchronous>, transform_indices = @transform_1, window_bounds = array<i64: 1, 128>}, {transform_indices = @transform_2, window_bounds = array<i64: 512, 128>}]} {
    %c0 = arith.constant 0 : index
    %c0_0 = arith.constant 0 : index
    %0 = vector.load %arg1[%c0, %c0_0] : memref<512x128xf32, #tpu.memory_space<vmem>>, vector<512x128xf32>
    %c0_1 = arith.constant 0 : index
    %c0_2 = arith.constant 0 : index
    %1 = vector.load %arg2[%c0_1, %c0_2] : memref<1x128xf32, #tpu.memory_space<vmem>>, vector<1x128xf32>
    %2 = vector.broadcast %1 : vector<1x128xf32> to vector<512x128xf32>
    %3 = arith.mulf %0, %2 : vector<512x128xf32>
    %c0_3 = arith.constant 0 : index
    %c0_4 = arith.constant 0 : index
    %4 = vector.load %arg3[%c0_3, %c0_4] : memref<512x128xf32, #tpu.memory_space<vmem>>, vector<512x128xf32>
    tpu.vector_store %arg3[%c0_3, %c0_4], %3 {strides = array<i32>} : memref<512x128xf32, #tpu.memory_space<vmem>>, vector<512x128xf32>,
    return
  }
  func.func @transform_0(%arg0: i32) -> (i32, i32) {
    %c0_i32 = arith.constant 0 : i32
    %c0_i32_0 = arith.constant 0 : i32
    return %arg0, %c0_i32 : i32, i32
  }
  func.func @transform_1(%arg0: i32) -> (i32, i32) {
    %c0_i32 = arith.constant 0 : i32
    %c0_i32_0 = arith.constant 0 : i32
    %c0_i32_1 = arith.constant 0 : i32
    return %c0_i32, %c0_i32_0 : i32, i32
  }
  func.func @transform_2(%arg0: i32) -> (i32, i32) {
    %c0_i32 = arith.constant 0 : i32
    %c0_i32_0 = arith.constant 0 : i32
    return %arg0, %c0_i32 : i32, i32
  }
}

</mosaic_0001>

<llo_original>
// kernel: tpu_custom_call.1
$region0: #{tpu_custom_call.1}
  #allocation0 [shape = 'u32[]', space=smem, size = 0x4, offset = 0x4, fixed_abs, tag = 'smem constant byte address 0x4 - core index']
  #allocation1 [shape = 'u32[144,128]{1,0:T(1,128)}', space=vmem, size = 0x12000, scoped, tag = 'internal scratch']
  %s0 = inlined_call_operand.hbm [shape: f32[2048,128], index: 0, kind: input, shape index: {}]
  %s1 = inlined_call_operand.vmem [shape: f32[1,128], index: 1, kind: input, shape index: {}]
  %s2 = inlined_call_operand.hbm [shape: f32[2048,128], index: 2, kind: output, shape index: {}]
  %s3 = sld [smem:[#allocation0]]
  $region45: #{tpu_custom_call.1} parent=0
    _
  %s5 = ssub.s32 1, %s3
  %s6 = scalar_select 0, %s5, %s3
  $region1: #{tpu_custom_call.1} parent=0
    #allocation2 [shape = 'u8[524288]{0}', space=vmem, size = 0x80000, scoped, tag = 'input window, operand 0']
    #allocation3 [shape = 's32[2]{0}', space=sflag, size = 0x8, scoped, tag = 'scoped memory for tpu_custom_call.1']
    #allocation4 [shape = 's32[2]{0}', space=sflag, size = 0x8, scoped, tag = 'scoped memory for tpu_custom_call.1']
    #allocation5 [shape = 'u8[524288]{0}', space=vmem, size = 0x80000, scoped, tag = 'output window, operand 0']
    %7 = vsyncpa [#allocation3], 0
    %s8 = scalar_lea.sflag [#allocation3], 1
    %9 = vsyncpa %s8, 0
    %10 = vsyncpa [#allocation4], 0
    %s11 = scalar_lea.sflag [#allocation4], 1
    %12 = vsyncpa %s11, 0
    loop: start=0, step=1, limit=6
    $region2: #{tpu_custom_call.1} parent=1 // loop_pre_header
      _
    $region3: #{tpu_custom_call.1} parent=1 // loop_header
      %s14 = sphi 0, %s18
      %p15 = scmp.ge.s32.totalorder %s14, 6
      %s24 = sphi 0, %s26
      %s27 = sphi 0, %s24
      %s28 = sphi 0, %s27
      %s44 = sphi 0, %s28
      %s48 = sphi 0, %s48
      %s50 = sphi 0, %s48
      %s51 = sphi 0, %s50
      %s65 = sphi 0, %s51
      %s71 = sphi 0, %s73
      %s74 = sphi 0, %s71
      %s75 = sphi 0, %s74
      %s91 = sphi 0, %s75
    $region4: #{tpu_custom_call.1} parent=1 // loop_header_branch
      %17 = sbr.rel (%p15) target = $region8
    $region5: #{tpu_custom_call.1} parent=1 // loop_body
      %s19 = ssub.s32 %s14, 1
      %s20 = ssub.s32 %s14, 2
      %s21 = sadd.s32 %s14, 1
      %s22 = ssub.s32 %s14, %s21
      %p23 = scmp.eq.s32.totalorder %s22, 0
      %s25 = sadd.s32 %s24, 1
      %s26 = scalar_select %p23, %s24, %s25
      %p29 = pneg %p23
      %p30 = scmp.eq.s32.totalorder %s14, 3
      %p31 = por %p29, %p30
      %p32 = scmp.ne.s32.totalorder %s24, %s27
      %p33 = scmp.eq.s32.totalorder %s14, 0
      %p34 = por %p32, %p33
      %p35 = scmp.ne.s32.totalorder %s24, %s27
      %p36 = scmp.eq.s32.totalorder %s19, 3
      %p37 = por %p35, %p36
      %p38 = scmp.ne.s32.totalorder %s27, %s28
      %p39 = scmp.eq.s32.totalorder %s19, 0
      %p40 = por %p38, %p39
      %p41 = scmp.ne.s32.totalorder %s27, %s28
      %p42 = scmp.eq.s32.totalorder %s20, 3
      %p43 = por %p41, %p42
      %p45 = scmp.ne.s32.totalorder %s28, %s44
      %p46 = scmp.eq.s32.totalorder %s20, 0
      %p47 = por %p45, %p46
      %s49 = sadd.s32 %s48, 1
      %p52 = scmp.eq.s32.totalorder %s14, 3
      %p53 = scmp.ne.s32.totalorder %s48, %s50
      %p54 = scmp.eq.s32.totalorder %s14, 0
      %p55 = por %p53, %p54
      %p56 = scmp.ne.s32.totalorder %s48, %s50
      %p57 = scmp.eq.s32.totalorder %s19, 3
      %p58 = por %p56, %p57
      %p59 = scmp.ne.s32.totalorder %s50, %s51
      %p60 = scmp.eq.s32.totalorder %s19, 0
      %p61 = por %p59, %p60
      %p62 = scmp.ne.s32.totalorder %s50, %s51
      %p63 = scmp.eq.s32.totalorder %s20, 3
      %p64 = por %p62, %p63
      %p66 = scmp.ne.s32.totalorder %s51, %s65
      %p67 = scmp.eq.s32.totalorder %s20, 0
      %p68 = por %p66, %p67
      %s69 = ssub.s32 %s14, %s21
      %p70 = scmp.eq.s32.totalorder %s69, 0
      %s72 = sadd.s32 %s71, 1
      %s73 = scalar_select %p70, %s71, %s72
      %p76 = pneg %p70
      %p77 = scmp.eq.s32.totalorder %s14, 3
      %p78 = por %p76, %p77
      %p79 = scmp.ne.s32.totalorder %s71, %s74
      %p80 = scmp.eq.s32.totalorder %s14, 0
      %p81 = por %p79, %p80
      %p82 = scmp.ne.s32.totalorder %s71, %s74
      %p83 = scmp.eq.s32.totalorder %s19, 3
      %p84 = por %p82, %p83
      %p85 = scmp.ne.s32.totalorder %s74, %s75
      %p86 = scmp.eq.s32.totalorder %s19, 0
      %p87 = por %p85, %p86
      %p88 = scmp.ne.s32.totalorder %s74, %s75
      %p89 = scmp.eq.s32.totalorder %s20, 3
      %p90 = por %p88, %p89
      %p92 = scmp.ne.s32.totalorder %s75, %s91
      %p93 = scmp.eq.s32.totalorder %s20, 0
      %p94 = por %p92, %p93
      %p95 = scmp.le.s32.totalorder 1, %s14
      %p96 = scmp.lt.s32.totalorder %s14, 5
      %p97 = pnand %p95, %p96
      %p98 = pneg %p97
      // Predicated region
      $region9: #{tpu_custom_call.1} parent=5 // pred_check
        _
      $region10: #{tpu_custom_call.1} parent=5 // pred_check_branch
        %100 = sbr.rel (%p97) target = $region12
      $region11: #{tpu_custom_call.1} parent=5 // pred_region
        %s101 = ssub.s32 %s14, 1
        // Predicated region
        $region13: #{tpu_custom_call.1} parent=11 // pred_check
          %p102 = pneg %p61
        $region14: #{tpu_custom_call.1} parent=11 // pred_check_branch
          %104 = sbr.rel (%p102) target = $region16
        $region15: #{tpu_custom_call.1} parent=11 // pred_region
          _
        $region16: #{tpu_custom_call.1} parent=11 // pred_fallthru
          _
      $region12: #{tpu_custom_call.1} parent=5 // pred_fallthru
        _
      %p105 = scmp.lt.s32.totalorder %s14, 4
      // Predicated region
      $region17: #{tpu_custom_call.1} parent=5 // pred_check
        %p106 = pneg %p105
      $region18: #{tpu_custom_call.1} parent=5 // pred_check_branch
        %108 = sbr.rel (%p106) target = $region20
      $region19: #{tpu_custom_call.1} parent=5 // pred_region
        // Predicated region
        $region21: #{tpu_custom_call.1} parent=19 // pred_check
          %p109 = pneg %p34
        $region22: #{tpu_custom_call.1} parent=19 // pred_check_branch
          %111 = sbr.rel (%p109) target = $region24
        $region23: #{tpu_custom_call.1} parent=19 // pred_region
          %s112 = sand.u32 %s24, 1
          %s113 = scalar_lea.sflag [#allocation3], %s112
          %s114 = sand.u32 %s24, 1
          %s115 = smul.addr %s114, 512
          %s116 = scalar_lea.vmem [#allocation2], %s115
          %s117 = smul.u32 64, %s14
          %s119 = ssub.s32 8192, 8192
          %120 = vsyncadd %s113, %s119
          %s121 = smul.addr %s117, 128
          %s122 = scalar_lea.hbm %s0, %s121
          %s123 = sshll.u32 %s116, 4
          %s124 = int_to_ptr.vmem [resolvable:$true] %s123
          %129 = dma.hbm_to_vmem [thread:$0]  %s122, 8192, %s124, %s113, 128, 128, 8
        $region24: #{tpu_custom_call.1} parent=19 // pred_fallthru
          _
      $region20: #{tpu_custom_call.1} parent=5 // pred_fallthru
        _
      %p130 = scmp.le.s32.totalorder 1, %s14
      %p131 = scmp.lt.s32.totalorder %s14, 5
      %p132 = pnand %p130, %p131
      %p133 = pneg %p132
      // Predicated region
      $region25: #{tpu_custom_call.1} parent=5 // pred_check
        _
      $region26: #{tpu_custom_call.1} parent=5 // pred_check_branch
        %135 = sbr.rel (%p132) target = $region28
      $region27: #{tpu_custom_call.1} parent=5 // pred_region
        %s136 = ssub.s32 %s14, 1
        %s137 = sand.u32 %s27, 1
        %s138 = scalar_lea.sflag [#allocation3], %s137
        %s139 = sand.u32 %s27, 1
        %s140 = smul.addr %s139, 512
        %s141 = scalar_lea.vmem [#allocation2], %s140
        // Predicated region
        $region29: #{tpu_custom_call.1} parent=27 // pred_check
          %p142 = pneg %p40
        $region30: #{tpu_custom_call.1} parent=27 // pred_check_branch
          %144 = sbr.rel (%p142) target = $region32
        $region31: #{tpu_custom_call.1} parent=27 // pred_region
          %145 = dma.done %s138, 8192
        $region32: #{tpu_custom_call.1} parent=27 // pred_fallthru
          _
        %s146 = sand.u32 %s27, 1
        %s147 = scalar_lea.sflag [#allocation3], %s146
        %s148 = sand.u32 %s27, 1
        %s149 = smul.addr %s148, 512
        %s150 = scalar_lea.vmem [#allocation2], %s149
        %p151 = pneg %p40
        %p152 = pneg %p37
        %p153 = pneg %p61
        %p154 = pneg %p58
        %p155 = pneg %p87
        %p156 = pneg %p84
        %s157 = sand.u32 %s74, 1
        %s158 = scalar_lea.sflag [#allocation4], %s157
        %s159 = sand.u32 %s74, 1
        %s160 = smul.addr %s159, 512
        %s161 = scalar_lea.vmem [#allocation5], %s160
        %s162 = smul.u32 64, %s19
        %s163 = smul.u32 64, %s19
        %v164 = vld [vmem:[%s141] sm:$0xff]
        %v165 = vld [vmem:[%s141 + $0x8] sm:$0xff]
        %v166 = vld [vmem:[%s141 + $0x10] sm:$0xff]
        %v167 = vld [vmem:[%s141 + $0x18] sm:$0xff]
        %v168 = vld [vmem:[%s141 + $0x20] sm:$0xff]
        %v169 = vld [vmem:[%s141 + $0x28] sm:$0xff]
        %v170 = vld [vmem:[%s141 + $0x30] sm:$0xff]
        %v171 = vld [vmem:[%s141 + $0x38] sm:$0xff]
        %v172 = vld [vmem:[%s141 + $0x40] sm:$0xff]
        %v173 = vld [vmem:[%s141 + $0x48] sm:$0xff]
        %v174 = vld [vmem:[%s141 + $0x50] sm:$0xff]
        %v175 = vld [vmem:[%s141 + $0x58] sm:$0xff]
        %v176 = vld [vmem:[%s141 + $0x60] sm:$0xff]
        %v177 = vld [vmem:[%s141 + $0x68] sm:$0xff]
        %v178 = vld [vmem:[%s141 + $0x70] sm:$0xff]
        %v179 = vld [vmem:[%s141 + $0x78] sm:$0xff]
        %v180 = vld [vmem:[%s141 + $0x80] sm:$0xff]
        %v181 = vld [vmem:[%s141 + $0x88] sm:$0xff]
        %v182 = vld [vmem:[%s141 + $0x90] sm:$0xff]
        %v183 = vld [vmem:[%s141 + $0x98] sm:$0xff]
        %v184 = vld [vmem:[%s141 + $0xa0] sm:$0xff]
        %v185 = vld [vmem:[%s141 + $0xa8] sm:$0xff]
        %v186 = vld [vmem:[%s141 + $0xb0] sm:$0xff]
        %v187 = vld [vmem:[%s141 + $0xb8] sm:$0xff]
        %v188 = vld [vmem:[%s141 + $0xc0] sm:$0xff]
        %v189 = vld [vmem:[%s141 + $0xc8] sm:$0xff]
        %v190 = vld [vmem:[%s141 + $0xd0] sm:$0xff]
        %v191 = vld [vmem:[%s141 + $0xd8] sm:$0xff]
        %v192 = vld [vmem:[%s141 + $0xe0] sm:$0xff]
        %v193 = vld [vmem:[%s141 + $0xe8] sm:$0xff]
        %v194 = vld [vmem:[%s141 + $0xf0] sm:$0xff]
        %v195 = vld [vmem:[%s141 + $0xf8] sm:$0xff]
        %v196 = vld [vmem:[%s141 + $0x100] sm:$0xff]
        %v197 = vld [vmem:[%s141 + $0x108] sm:$0xff]
        %v198 = vld [vmem:[%s141 + $0x110] sm:$0xff]
        %v199 = vld [vmem:[%s141 + $0x118] sm:$0xff]
        %v200 = vld [vmem:[%s141 + $0x120] sm:$0xff]
        %v201 = vld [vmem:[%s141 + $0x128] sm:$0xff]
        %v202 = vld [vmem:[%s141 + $0x130] sm:$0xff]
        %v203 = vld [vmem:[%s141 + $0x138] sm:$0xff]
        %v204 = vld [vmem:[%s141 + $0x140] sm:$0xff]
        %v205 = vld [vmem:[%s141 + $0x148] sm:$0xff]
        %v206 = vld [vmem:[%s141 + $0x150] sm:$0xff]
        %v207 = vld [vmem:[%s141 + $0x158] sm:$0xff]
        %v208 = vld [vmem:[%s141 + $0x160] sm:$0xff]
        %v209 = vld [vmem:[%s141 + $0x168] sm:$0xff]
        %v210 = vld [vmem:[%s141 + $0x170] sm:$0xff]
        %v211 = vld [vmem:[%s141 + $0x178] sm:$0xff]
        %v212 = vld [vmem:[%s141 + $0x180] sm:$0xff]
        %v213 = vld [vmem:[%s141 + $0x188] sm:$0xff]
        %v214 = vld [vmem:[%s141 + $0x190] sm:$0xff]
        %v215 = vld [vmem:[%s141 + $0x198] sm:$0xff]
        %v216 = vld [vmem:[%s141 + $0x1a0] sm:$0xff]
        %v217 = vld [vmem:[%s141 + $0x1a8] sm:$0xff]
        %v218 = vld [vmem:[%s141 + $0x1b0] sm:$0xff]
        %v219 = vld [vmem:[%s141 + $0x1b8] sm:$0xff]
        %v220 = vld [vmem:[%s141 + $0x1c0] sm:$0xff]
        %v221 = vld [vmem:[%s141 + $0x1c8] sm:$0xff]
        %v222 = vld [vmem:[%s141 + $0x1d0] sm:$0xff]
        %v223 = vld [vmem:[%s141 + $0x1d8] sm:$0xff]
        %v224 = vld [vmem:[%s141 + $0x1e0] sm:$0xff]
        %v225 = vld [vmem:[%s141 + $0x1e8] sm:$0xff]
        %v226 = vld [vmem:[%s141 + $0x1f0] sm:$0xff]
        %v227 = vld [vmem:[%s141 + $0x1f8] sm:$0xff]
        %v228 = vld [vmem:[%s1] sm:$0x1]
        %v230 = vlaneseq
        %v231 = vshrl.u32 %v230, 7
        %v232 = vsub.s32 0, %v231
        %v233 = vrot.slane %v228, %v232
        %v235 = vmul.f32 %v164, %v233
        %v236 = vmul.f32 %v165, %v233
        %v237 = vmul.f32 %v166, %v233
        %v238 = vmul.f32 %v167, %v233
        %v239 = vmul.f32 %v168, %v233
        %v240 = vmul.f32 %v169, %v233
        %v241 = vmul.f32 %v170, %v233
        %v242 = vmul.f32 %v171, %v233
        %v243 = vmul.f32 %v172, %v233
        %v244 = vmul.f32 %v173, %v233
        %v245 = vmul.f32 %v174, %v233
        %v246 = vmul.f32 %v175, %v233
        %v247 = vmul.f32 %v176, %v233
        %v248 = vmul.f32 %v177, %v233
        %v249 = vmul.f32 %v178, %v233
        %v250 = vmul.f32 %v179, %v233
        %v251 = vmul.f32 %v180, %v233
        %v252 = vmul.f32 %v181, %v233
        %v253 = vmul.f32 %v182, %v233
        %v254 = vmul.f32 %v183, %v233
        %v255 = vmul.f32 %v184, %v233
        %v256 = vmul.f32 %v185, %v233
        %v257 = vmul.f32 %v186, %v233
        %v258 = vmul.f32 %v187, %v233
        %v259 = vmul.f32 %v188, %v233
        %v260 = vmul.f32 %v189, %v233
        %v261 = vmul.f32 %v190, %v233
        %v262 = vmul.f32 %v191, %v233
        %v263 = vmul.f32 %v192, %v233
        %v264 = vmul.f32 %v193, %v233
        %v265 = vmul.f32 %v194, %v233
        %v266 = vmul.f32 %v195, %v233
        %v267 = vmul.f32 %v196, %v233
        %v268 = vmul.f32 %v197, %v233
        %v269 = vmul.f32 %v198, %v233
        %v270 = vmul.f32 %v199, %v233
        %v271 = vmul.f32 %v200, %v233
        %v272 = vmul.f32 %v201, %v233
        %v273 = vmul.f32 %v202, %v233
        %v274 = vmul.f32 %v203, %v233
        %v275 = vmul.f32 %v204, %v233
        %v276 = vmul.f32 %v205, %v233
        %v277 = vmul.f32 %v206, %v233
        %v278 = vmul.f32 %v207, %v233
        %v279 = vmul.f32 %v208, %v233
        %v280 = vmul.f32 %v209, %v233
        %v281 = vmul.f32 %v210, %v233
        %v282 = vmul.f32 %v211, %v233
        %v283 = vmul.f32 %v212, %v233
        %v284 = vmul.f32 %v213, %v233
        %v285 = vmul.f32 %v214, %v233
        %v286 = vmul.f32 %v215, %v233
        %v287 = vmul.f32 %v216, %v233
        %v288 = vmul.f32 %v217, %v233
        %v289 = vmul.f32 %v218, %v233
        %v290 = vmul.f32 %v219, %v233
        %v291 = vmul.f32 %v220, %v233
        %v292 = vmul.f32 %v221, %v233
        %v293 = vmul.f32 %v222, %v233
        %v294 = vmul.f32 %v223, %v233
        %v295 = vmul.f32 %v224, %v233
        %v296 = vmul.f32 %v225, %v233
        %v297 = vmul.f32 %v226, %v233
        %v298 = vmul.f32 %v227, %v233
        %299 = vst [vmem:[%s161] sm:$0xff] %v235
        %300 = vst [vmem:[%s161 + $0x8] sm:$0xff] %v236
        %301 = vst [vmem:[%s161 + $0x10] sm:$0xff] %v237
        %302 = vst [vmem:[%s161 + $0x18] sm:$0xff] %v238
        %303 = vst [vmem:[%s161 + $0x20] sm:$0xff] %v239
        %304 = vst [vmem:[%s161 + $0x28] sm:$0xff] %v240
        %305 = vst [vmem:[%s161 + $0x30] sm:$0xff] %v241
        %306 = vst [vmem:[%s161 + $0x38] sm:$0xff] %v242
        %307 = vst [vmem:[%s161 + $0x40] sm:$0xff] %v243
        %308 = vst [vmem:[%s161 + $0x48] sm:$0xff] %v244
        %309 = vst [vmem:[%s161 + $0x50] sm:$0xff] %v245
        %310 = vst [vmem:[%s161 + $0x58] sm:$0xff] %v246
        %311 = vst [vmem:[%s161 + $0x60] sm:$0xff] %v247
        %312 = vst [vmem:[%s161 + $0x68] sm:$0xff] %v248
        %313 = vst [vmem:[%s161 + $0x70] sm:$0xff] %v249
        %314 = vst [vmem:[%s161 + $0x78] sm:$0xff] %v250
        %315 = vst [vmem:[%s161 + $0x80] sm:$0xff] %v251
        %316 = vst [vmem:[%s161 + $0x88] sm:$0xff] %v252
        %317 = vst [vmem:[%s161 + $0x90] sm:$0xff] %v253
        %318 = vst [vmem:[%s161 + $0x98] sm:$0xff] %v254
        %319 = vst [vmem:[%s161 + $0xa0] sm:$0xff] %v255
        %320 = vst [vmem:[%s161 + $0xa8] sm:$0xff] %v256
        %321 = vst [vmem:[%s161 + $0xb0] sm:$0xff] %v257
        %322 = vst [vmem:[%s161 + $0xb8] sm:$0xff] %v258
        %323 = vst [vmem:[%s161 + $0xc0] sm:$0xff] %v259
        %324 = vst [vmem:[%s161 + $0xc8] sm:$0xff] %v260
        %325 = vst [vmem:[%s161 + $0xd0] sm:$0xff] %v261
        %326 = vst [vmem:[%s161 + $0xd8] sm:$0xff] %v262
        %327 = vst [vmem:[%s161 + $0xe0] sm:$0xff] %v263
        %328 = vst [vmem:[%s161 + $0xe8] sm:$0xff] %v264
        %329 = vst [vmem:[%s161 + $0xf0] sm:$0xff] %v265
        %330 = vst [vmem:[%s161 + $0xf8] sm:$0xff] %v266
        %331 = vst [vmem:[%s161 + $0x100] sm:$0xff] %v267
        %332 = vst [vmem:[%s161 + $0x108] sm:$0xff] %v268
        %333 = vst [vmem:[%s161 + $0x110] sm:$0xff] %v269
        %334 = vst [vmem:[%s161 + $0x118] sm:$0xff] %v270
        %335 = vst [vmem:[%s161 + $0x120] sm:$0xff] %v271
        %336 = vst [vmem:[%s161 + $0x128] sm:$0xff] %v272
        %337 = vst [vmem:[%s161 + $0x130] sm:$0xff] %v273
        %338 = vst [vmem:[%s161 + $0x138] sm:$0xff] %v274
        %339 = vst [vmem:[%s161 + $0x140] sm:$0xff] %v275
        %340 = vst [vmem:[%s161 + $0x148] sm:$0xff] %v276
        %341 = vst [vmem:[%s161 + $0x150] sm:$0xff] %v277
        %342 = vst [vmem:[%s161 + $0x158] sm:$0xff] %v278
        %343 = vst [vmem:[%s161 + $0x160] sm:$0xff] %v279
        %344 = vst [vmem:[%s161 + $0x168] sm:$0xff] %v280
        %345 = vst [vmem:[%s161 + $0x170] sm:$0xff] %v281
        %346 = vst [vmem:[%s161 + $0x178] sm:$0xff] %v282
        %347 = vst [vmem:[%s161 + $0x180] sm:$0xff] %v283
        %348 = vst [vmem:[%s161 + $0x188] sm:$0xff] %v284
        %349 = vst [vmem:[%s161 + $0x190] sm:$0xff] %v285
        %350 = vst [vmem:[%s161 + $0x198] sm:$0xff] %v286
        %351 = vst [vmem:[%s161 + $0x1a0] sm:$0xff] %v287
        %352 = vst [vmem:[%s161 + $0x1a8] sm:$0xff] %v288
        %353 = vst [vmem:[%s161 + $0x1b0] sm:$0xff] %v289
        %354 = vst [vmem:[%s161 + $0x1b8] sm:$0xff] %v290
        %355 = vst [vmem:[%s161 + $0x1c0] sm:$0xff] %v291
        %356 = vst [vmem:[%s161 + $0x1c8] sm:$0xff] %v292
        %357 = vst [vmem:[%s161 + $0x1d0] sm:$0xff] %v293
        %358 = vst [vmem:[%s161 + $0x1d8] sm:$0xff] %v294
        %359 = vst [vmem:[%s161 + $0x1e0] sm:$0xff] %v295
        %360 = vst [vmem:[%s161 + $0x1e8] sm:$0xff] %v296
        %361 = vst [vmem:[%s161 + $0x1f0] sm:$0xff] %v297
        %362 = vst [vmem:[%s161 + $0x1f8] sm:$0xff] %v298
        %s363 = sand.u32 %s74, 1
        %s364 = scalar_lea.sflag [#allocation4], %s363
        %s365 = sand.u32 %s74, 1
        %s366 = smul.addr %s365, 512
        %s367 = scalar_lea.vmem [#allocation5], %s366
        // Predicated region
        $region33: #{tpu_custom_call.1} parent=27 // pred_check
          %p368 = pneg %p84
        $region34: #{tpu_custom_call.1} parent=27 // pred_check_branch
          %370 = sbr.rel (%p368) target = $region36
        $region35: #{tpu_custom_call.1} parent=27 // pred_region
          %s371 = smul.u32 64, %s19
          %s373 = ssub.s32 8192, 8192
          %374 = vsyncadd %s364, %s373
          %s375 = smul.addr %s371, 128
          %s376 = scalar_lea.hbm %s2, %s375
          %s377 = sshll.u32 %s367, 4
          %s378 = int_to_ptr.vmem [resolvable:$true] %s377
          %383 = dma.vmem_to_hbm [thread:$0]  %s378, 8192, %s376, %s364, 128, 128, 8
        $region36: #{tpu_custom_call.1} parent=27 // pred_fallthru
          _
      $region28: #{tpu_custom_call.1} parent=5 // pred_fallthru
        _
      %p384 = scmp.le.s32.totalorder 2, %s14
      // Predicated region
      $region37: #{tpu_custom_call.1} parent=5 // pred_check
        %p385 = pneg %p384
      $region38: #{tpu_custom_call.1} parent=5 // pred_check_branch
        %387 = sbr.rel (%p385) target = $region40
      $region39: #{tpu_custom_call.1} parent=5 // pred_region
        %s388 = ssub.s32 %s14, 2
        // Predicated region
        $region41: #{tpu_custom_call.1} parent=39 // pred_check
          %p389 = pneg %p90
        $region42: #{tpu_custom_call.1} parent=39 // pred_check_branch
          %391 = sbr.rel (%p389) target = $region44
        $region43: #{tpu_custom_call.1} parent=39 // pred_region
          %s392 = sand.u32 %s75, 1
          %s393 = scalar_lea.sflag [#allocation4], %s392
          %s394 = sand.u32 %s75, 1
          %s395 = smul.addr %s394, 512
          %s396 = scalar_lea.vmem [#allocation5], %s395
          %397 = dma.done %s393, 8192
        $region44: #{tpu_custom_call.1} parent=39 // pred_fallthru
          _
      $region40: #{tpu_custom_call.1} parent=5 // pred_fallthru
        _
    $region6: #{tpu_custom_call.1} parent=1 // loop_footer
      %s18 = sadd.s32 1, %s14
    $region7: #{tpu_custom_call.1} parent=1 // loop_footer_branch
      %13 = sbr.rel target = $region3
    $region8: #{tpu_custom_call.1} parent=1 // loop_exit
      _
    %398 = vsyncpa [#allocation3], 1
    %s399 = scalar_lea.sflag [#allocation3], 1
    %400 = vsyncpa %s399, 1
    %401 = vsyncpa [#allocation4], 1
    %s402 = scalar_lea.sflag [#allocation4], 1
    %403 = vsyncpa %s402, 1

</llo_original>
